<compile_context>
chip_gen: v5e
topology: v5e:2x2
jax: 0.10.0
libtpu: 0.0.40
codegen_flags: <defaults>
</compile_context>

<pallas_src>
import functools

import jax
import jax.numpy as jnp
from jax.experimental import pallas as pl
from jax.experimental.pallas import tpu as pltpu


def _dtype_bits(dtype) -> int:
    d = jnp.dtype(dtype)
    if jnp.issubdtype(d, jnp.floating):
        return jnp.finfo(d).bits
    if jnp.issubdtype(d, jnp.integer):
        return jnp.iinfo(d).bits
    return d.itemsize * 8


def _make_strips(n_rows, packing, strip_bytes, max_strips, row_bytes):
    """Split [0, n_rows) into <= max_strips row ranges, each starting on a
    sublane-packing boundary.  Returns a tuple of (row_start, n_rows)."""
    if n_rows == 0:
        return ()
    if max_strips <= 1 or strip_bytes <= 0:
        return ((0, n_rows),)
    n = min(max_strips, max(1, (n_rows * row_bytes) // strip_bytes))
    if n <= 1:
        return ((0, n_rows),)
    base = (n_rows // n) // packing * packing
    if base == 0:
        return ((0, n_rows),)
    strips = []
    r = 0
    for _ in range(n - 1):
        strips.append((r, base))
        r += base
    strips.append((r, n_rows - r))
    return tuple(strips)


def _ghost_cat_kernel(x_hbm, g_hbm, o_hbm, sems, *fixup,
                      n_x, n_g, aligned, tail, x_strips, g_strips, chunk_rows):
    """Concat kernel body.  All sizes/offsets are static Python ints."""
    pending = []

    # ---- Bulk of x: direct HBM->HBM DMA, one descriptor per strip. -------
    for i, (r0, nr) in enumerate(x_strips):
        cp = pltpu.make_async_copy(
            x_hbm.at[pl.ds(r0, nr), :], o_hbm.at[pl.ds(r0, nr), :], sems.at[i])
        cp.start()
        pending.append(cp)
    base = len(x_strips)

    if tail == 0:
        # ---- Aligned boundary: ghost also goes straight HBM->HBM. --------
        for j, (r0, nr) in enumerate(g_strips):
            cp = pltpu.make_async_copy(
                g_hbm.at[pl.ds(r0, nr), :],
                o_hbm.at[pl.ds(n_x + r0, nr), :], sems.at[base + j])
            cp.start()
            pending.append(cp)
    else:
        # ---- Unaligned boundary: fix-up region out[aligned : n_x+n_g] ----
        # is concat(x[aligned:n_x], ghost) and every row lands `tail` rows
        # off a sublane-tile boundary, so it is retiled through VMEM in
        # bounded chunks.  Destinations stay tile-aligned; chunks overlap by
        # `tail` rows with identical contents (harmless rewrite).
        g_vmem, asm_vmem = fixup
        sem_ld = sems.at[base]
        sem_st = sems.at[base + 1]

        # Prefix for chunk 0: the unaligned tail rows of x.
        tail_cp = pltpu.make_async_copy(
            x_hbm.at[pl.ds(aligned, tail), :],
            asm_vmem.at[pl.ds(0, tail), :], sem_ld)
        tail_cp.start()
        tail_cp.wait()

        n_chunks = (n_g + chunk_rows - 1) // chunk_rows
        prev_store = None
        for c in range(n_chunks):
            cur = min(chunk_rows, n_g - c * chunk_rows)
            load_cp = pltpu.make_async_copy(
                g_hbm.at[pl.ds(c * chunk_rows, cur), :],
                g_vmem.at[pl.ds(0, cur), :], sem_ld)
            load_cp.start()          # overlaps with the previous chunk's store
            load_cp.wait()
            if prev_store is not None:
                prev_store.wait()    # asm buffer free again
            if c > 0:
                # Carry: last `tail` ghost rows of the previous chunk are
                # already resident at the end of the assembled buffer.
                asm_vmem[pl.ds(0, tail), :] = asm_vmem[pl.ds(chunk_rows, tail), :]
            asm_vmem[pl.ds(tail, cur), :] = g_vmem[pl.ds(0, cur), :]
            store_cp = pltpu.make_async_copy(
                asm_vmem.at[pl.ds(0, tail + cur), :],
                o_hbm.at[pl.ds(aligned + c * chunk_rows, tail + cur), :], sem_st)
            store_cp.start()
            prev_store = store_cp
        if prev_store is not None:
            prev_store.wait()

    for cp in pending:
        cp.wait()


def ghost_control_cat(x, ghost, *,
                      small_fallback_bytes=(256 << 10),
                      dma_strip_bytes=(8 << 20),
                      max_strips=4,
                      fixup_chunk_bytes=(2 << 20)):
    """Pallas equivalent of GhostControlCat.forward on the node-feature arrays.

    x:     [n_x, hidden]   real node features
    ghost: [n_g, hidden]   ghost node features
    returns [n_x + n_g, hidden] == concat([x, ghost], axis=0)
    """
    assert x.ndim == 2 and ghost.ndim == 2
    assert x.shape[1] == ghost.shape[1], "feature dims must match"
    assert x.dtype == ghost.dtype
    n_x, hidden = x.shape
    n_g = ghost.shape[0]

    # Empty-input shortcuts (note: returns the input array itself, not a copy).
    if n_x == 0:
        return ghost
    if n_g == 0:
        return x

    bits = _dtype_bits(x.dtype)
    if bits not in (8, 16, 32):
        # Sub-byte (int4/fp4) or 64-bit dtypes have different sublane packing
        # rules; keep those on XLA's native concatenate.
        return jnp.concatenate([x, ghost], axis=0)
    itemsize = bits // 8
    packing = 32 // itemsize          # rows per sublane tile: 8 / 16 / 32

    total_bytes = (n_x + n_g) * hidden * itemsize
    if hidden == 0 or total_bytes < small_fallback_bytes:
        # Tiny graphs are dominated by custom-call dispatch + DMA setup;
        # XLA's concat fuses into neighbours and is cheaper at this scale.
        return jnp.concatenate([x, ghost], axis=0)

    aligned = (n_x // packing) * packing
    tail = n_x - aligned
    # HBM/VMEM rows are padded to 128 lanes; size heuristics use padded bytes.
    row_bytes_padded = -(-hidden // 128) * 128 * itemsize

    x_strips = _make_strips(aligned, packing, dma_strip_bytes, max_strips,
                            row_bytes_padded)
    if tail == 0:
        g_strips = _make_strips(n_g, packing, dma_strip_bytes, max_strips,
                                row_bytes_padded)
        n_sems = len(x_strips) + len(g_strips)
        scratch = [pltpu.SemaphoreType.DMA((n_sems,))]
        chunk_rows = 0
    else:
        g_strips = ()
        # Chunk rows for the VMEM fix-up: ~fixup_chunk_bytes per buffer,
        # multiple of the sublane packing, never more than needed for n_g.
        chunk_rows = max(packing,
                         (fixup_chunk_bytes // row_bytes_padded) // packing * packing)
        chunk_rows = min(chunk_rows, -(-n_g // packing) * packing)
        n_sems = len(x_strips) + 2
        scratch = [pltpu.SemaphoreType.DMA((n_sems,)),
                   pltpu.VMEM((chunk_rows, hidden), x.dtype),            # ghost chunk
                   pltpu.VMEM((chunk_rows + packing, hidden), x.dtype)]  # assembled

    kernel = functools.partial(
        _ghost_cat_kernel, n_x=n_x, n_g=n_g, aligned=aligned, tail=tail,
        x_strips=x_strips, g_strips=g_strips, chunk_rows=chunk_rows)

    return pl.pallas_call(
        kernel,
        out_shape=jax.ShapeDtypeStruct((n_x + n_g, hidden), x.dtype),
        in_specs=[
            pl.BlockSpec(memory_space=pl.ANY),   # x stays in HBM
            pl.BlockSpec(memory_space=pl.ANY),   # ghost stays in HBM
        ],
        out_specs=pl.BlockSpec(memory_space=pl.ANY),   # written by DMA
        scratch_shapes=scratch,
        # Pure HBM traffic, zero FLOPs: give XLA the byte count so it can
        # overlap this custom call with neighbouring compute.
        cost_estimate=pl.CostEstimate(
            flops=0, transcendentals=0, bytes_accessed=2 * total_bytes),
    )(x, ghost)


if __name__ == "__main__":
    key = jax.random.PRNGKey(0)
    k1, k2, k3, k4, k5, k6 = jax.random.split(key, 6)

    ok = True

    # 1) Aligned boundary, pure HBM->HBM path, strip-splitting forced via a
    #    tiny strip-byte threshold (exercises the multi-descriptor v7x path).
    xa = jax.random.normal(k1, (256, 128), dtype=jnp.float32)
    ga = jax.random.normal(k2, (64, 128), dtype=jnp.float32)
    outa = jax.block_until_ready(
        ghost_control_cat(xa, ga, small_fallback_bytes=0,
                          dma_strip_bytes=32 * 1024))
    ok &= bool(jnp.array_equal(outa, jnp.concatenate([xa, ga], axis=0)))
    ok &= outa.shape == (320, 128)

    # 2) Unaligned boundary (n_x=37, tail=5), hidden < 128, single fix-up chunk.
    xb = jax.random.normal(k3, (37, 32), dtype=jnp.float32)
    gb = jax.random.normal(k4, (21, 32), dtype=jnp.float32)
    outb = jax.block_until_ready(
        ghost_control_cat(xb, gb, small_fallback_bytes=0))
    ok &= bool(jnp.array_equal(outb, jnp.concatenate([xb, gb], axis=0)))

    # 3) Unaligned boundary with bf16 (packing=16, tail=3) and a tiny fix-up
    #    chunk size to force the multi-chunk carry path (7 chunks).
    xc = jax.random.normal(k5, (19, 128), dtype=jnp.bfloat16)
    gc = jax.random.normal(k6, (100, 128), dtype=jnp.bfloat16)
    outc = jax.block_until_ready(
        ghost_control_cat(xc, gc, small_fallback_bytes=0, fixup_chunk_bytes=1))
    ok &= bool(jnp.array_equal(outc, jnp.concatenate([xc, gc], axis=0)))

    # 4) Default small-size escape hatch (tiny inputs never launch the kernel).
    outd = jax.block_until_ready(ghost_control_cat(xb, gb))
    ok &= bool(jnp.array_equal(outd, jnp.concatenate([xb, gb], axis=0)))

    # 5) Empty-ghost shortcut.
    oute = jax.block_until_ready(
        ghost_control_cat(xa, jnp.zeros((0, 128), jnp.float32)))
    ok &= bool(jnp.array_equal(oute, xa))

    # NOTE: the PyTorch module also prints len(data[KEY_X]); here that value
    # is out.shape[0] == n_x + n_g (host-side concern, not part of the kernel).
    if ok:
        print("KERNEL_OK")
</pallas_src>

<mosaic_0001>
module attributes {stable_mosaic.version = 11 : i64} {
  func.func @_ghost_cat_kernel(%arg0: memref<256x128xf32, #tpu.memory_space<any>>, %arg1: memref<64x128xf32, #tpu.memory_space<any>>, %arg2: memref<320x128xf32, #tpu.memory_space<any>>, %arg3: memref<5x!tpu.dma_semaphore, #tpu.memory_space<semaphore_mem>>) attributes {dimension_semantics = [], scalar_prefetch = 0 : i64, scratch_operands = 1 : i64, tpu.core_type = #tpu.core_type<tc>} {
    %c0_i32 = arith.constant 0 : i32
    %c0_i32_0 = arith.constant 0 : i32
    %c0_i32_1 = arith.constant 0 : i32
    %0 = tpu.memref_slice %arg0[%c0_i32_0, %c0_i32_1] : memref<256x128xf32, #tpu.memory_space<any>> -> memref<64x128xf32, #tpu.memory_space<any>>
    %c0_i32_2 = arith.constant 0 : i32
    %c0_i32_3 = arith.constant 0 : i32
    %1 = tpu.memref_slice %arg2[%c0_i32_2, %c0_i32_3] : memref<320x128xf32, #tpu.memory_space<any>> -> memref<64x128xf32, #tpu.memory_space<any>>
    %2 = tpu.memref_slice %arg3[%c0_i32] : memref<5x!tpu.dma_semaphore, #tpu.memory_space<semaphore_mem>> -> memref<1x!tpu.dma_semaphore, #tpu.memory_space<semaphore_mem>>
    %3 = tpu.memref_squeeze %2 : memref<1x!tpu.dma_semaphore, #tpu.memory_space<semaphore_mem>> -> memref<!tpu.dma_semaphore, #tpu.memory_space<semaphore_mem>>
    tpu.enqueue_dma source(%0 : memref<64x128xf32, #tpu.memory_space<any>>) target(%1 : memref<64x128xf32, #tpu.memory_space<any>>) target_semaphore(%3 : memref<!tpu.dma_semaphore, #tpu.memory_space<semaphore_mem>>)
    %c1_i32 = arith.constant 1 : i32
    %c64_i32 = arith.constant 64 : i32
    %c0_i32_4 = arith.constant 0 : i32
    %4 = tpu.memref_slice %arg0[%c64_i32, %c0_i32_4] : memref<256x128xf32, #tpu.memory_space<any>> -> memref<64x128xf32, #tpu.memory_space<any>>
    %c64_i32_5 = arith.constant 64 : i32
    %c0_i32_6 = arith.constant 0 : i32
    %5 = tpu.memref_slice %arg2[%c64_i32_5, %c0_i32_6] : memref<320x128xf32, #tpu.memory_space<any>> -> memref<64x128xf32, #tpu.memory_space<any>>
    %6 = tpu.memref_slice %arg3[%c1_i32] : memref<5x!tpu.dma_semaphore, #tpu.memory_space<semaphore_mem>> -> memref<1x!tpu.dma_semaphore, #tpu.memory_space<semaphore_mem>>
    %7 = tpu.memref_squeeze %6 : memref<1x!tpu.dma_semaphore, #tpu.memory_space<semaphore_mem>> -> memref<!tpu.dma_semaphore, #tpu.memory_space<semaphore_mem>>
    tpu.enqueue_dma source(%4 : memref<64x128xf32, #tpu.memory_space<any>>) target(%5 : memref<64x128xf32, #tpu.memory_space<any>>) target_semaphore(%7 : memref<!tpu.dma_semaphore, #tpu.memory_space<semaphore_mem>>)
    %c2_i32 = arith.constant 2 : i32
    %c128_i32 = arith.constant 128 : i32
    %c0_i32_7 = arith.constant 0 : i32
    %8 = tpu.memref_slice %arg0[%c128_i32, %c0_i32_7] : memref<256x128xf32, #tpu.memory_space<any>> -> memref<64x128xf32, #tpu.memory_space<any>>
    %c128_i32_8 = arith.constant 128 : i32
    %c0_i32_9 = arith.constant 0 : i32
    %9 = tpu.memref_slice %arg2[%c128_i32_8, %c0_i32_9] : memref<320x128xf32, #tpu.memory_space<any>> -> memref<64x128xf32, #tpu.memory_space<any>>
    %10 = tpu.memref_slice %arg3[%c2_i32] : memref<5x!tpu.dma_semaphore, #tpu.memory_space<semaphore_mem>> -> memref<1x!tpu.dma_semaphore, #tpu.memory_space<semaphore_mem>>
    %11 = tpu.memref_squeeze %10 : memref<1x!tpu.dma_semaphore, #tpu.memory_space<semaphore_mem>> -> memref<!tpu.dma_semaphore, #tpu.memory_space<semaphore_mem>>
    tpu.enqueue_dma source(%8 : memref<64x128xf32, #tpu.memory_space<any>>) target(%9 : memref<64x128xf32, #tpu.memory_space<any>>) target_semaphore(%11 : memref<!tpu.dma_semaphore, #tpu.memory_space<semaphore_mem>>)
    %c3_i32 = arith.constant 3 : i32
    %c192_i32 = arith.constant 192 : i32
    %c0_i32_10 = arith.constant 0 : i32
    %12 = tpu.memref_slice %arg0[%c192_i32, %c0_i32_10] : memref<256x128xf32, #tpu.memory_space<any>> -> memref<64x128xf32, #tpu.memory_space<any>>
    %c192_i32_11 = arith.constant 192 : i32
    %c0_i32_12 = arith.constant 0 : i32
    %13 = tpu.memref_slice %arg2[%c192_i32_11, %c0_i32_12] : memref<320x128xf32, #tpu.memory_space<any>> -> memref<64x128xf32, #tpu.memory_space<any>>
    %14 = tpu.memref_slice %arg3[%c3_i32] : memref<5x!tpu.dma_semaphore, #tpu.memory_space<semaphore_mem>> -> memref<1x!tpu.dma_semaphore, #tpu.memory_space<semaphore_mem>>
    %15 = tpu.memref_squeeze %14 : memref<1x!tpu.dma_semaphore, #tpu.memory_space<semaphore_mem>> -> memref<!tpu.dma_semaphore, #tpu.memory_space<semaphore_mem>>
    tpu.enqueue_dma source(%12 : memref<64x128xf32, #tpu.memory_space<any>>) target(%13 : memref<64x128xf32, #tpu.memory_space<any>>) target_semaphore(%15 : memref<!tpu.dma_semaphore, #tpu.memory_space<semaphore_mem>>)
    %c4_i32 = arith.constant 4 : i32
    %c0_i32_13 = arith.constant 0 : i32
    %c0_i32_14 = arith.constant 0 : i32
    %16 = tpu.memref_slice %arg1[%c0_i32_13, %c0_i32_14] : memref<64x128xf32, #tpu.memory_space<any>> -> memref<64x128xf32, #tpu.memory_space<any>>
    %c256_i32 = arith.constant 256 : i32
    %c0_i32_15 = arith.constant 0 : i32
    %17 = tpu.memref_slice %arg2[%c256_i32, %c0_i32_15] : memref<320x128xf32, #tpu.memory_space<any>> -> memref<64x128xf32, #tpu.memory_space<any>>
    %18 = tpu.memref_slice %arg3[%c4_i32] : memref<5x!tpu.dma_semaphore, #tpu.memory_space<semaphore_mem>> -> memref<1x!tpu.dma_semaphore, #tpu.memory_space<semaphore_mem>>
    %19 = tpu.memref_squeeze %18 : memref<1x!tpu.dma_semaphore, #tpu.memory_space<semaphore_mem>> -> memref<!tpu.dma_semaphore, #tpu.memory_space<semaphore_mem>>
    tpu.enqueue_dma source(%16 : memref<64x128xf32, #tpu.memory_space<any>>) target(%17 : memref<64x128xf32, #tpu.memory_space<any>>) target_semaphore(%19 : memref<!tpu.dma_semaphore, #tpu.memory_space<semaphore_mem>>)
    %c0_i32_16 = arith.constant 0 : i32
    %c0_i32_17 = arith.constant 0 : i32
    %c0_i32_18 = arith.constant 0 : i32
    %20 = tpu.memref_slice %arg0[%c0_i32_17, %c0_i32_18] : memref<256x128xf32, #tpu.memory_space<any>> -> memref<64x128xf32, #tpu.memory_space<any>>
    %c0_i32_19 = arith.constant 0 : i32
    %c0_i32_20 = arith.constant 0 : i32
    %21 = tpu.memref_slice %arg2[%c0_i32_19, %c0_i32_20] : memref<320x128xf32, #tpu.memory_space<any>> -> memref<64x128xf32, #tpu.memory_space<any>>
    %22 = tpu.memref_slice %arg3[%c0_i32_16] : memref<5x!tpu.dma_semaphore, #tpu.memory_space<semaphore_mem>> -> memref<1x!tpu.dma_semaphore, #tpu.memory_space<semaphore_mem>>
    %23 = tpu.memref_squeeze %22 : memref<1x!tpu.dma_semaphore, #tpu.memory_space<semaphore_mem>> -> memref<!tpu.dma_semaphore, #tpu.memory_space<semaphore_mem>>
    tpu.wait_dma2 semaphore(%23 : memref<!tpu.dma_semaphore, #tpu.memory_space<semaphore_mem>>) src(%20 : memref<64x128xf32, #tpu.memory_space<any>>) dst(%21 : memref<64x128xf32, #tpu.memory_space<any>>)
    %c1_i32_21 = arith.constant 1 : i32
    %c64_i32_22 = arith.constant 64 : i32
    %c0_i32_23 = arith.constant 0 : i32
    %24 = tpu.memref_slice %arg0[%c64_i32_22, %c0_i32_23] : memref<256x128xf32, #tpu.memory_space<any>> -> memref<64x128xf32, #tpu.memory_space<any>>
    %c64_i32_24 = arith.constant 64 : i32
    %c0_i32_25 = arith.constant 0 : i32
    %25 = tpu.memref_slice %arg2[%c64_i32_24, %c0_i32_25] : memref<320x128xf32, #tpu.memory_space<any>> -> memref<64x128xf32, #tpu.memory_space<any>>
    %26 = tpu.memref_slice %arg3[%c1_i32_21] : memref<5x!tpu.dma_semaphore, #tpu.memory_space<semaphore_mem>> -> memref<1x!tpu.dma_semaphore, #tpu.memory_space<semaphore_mem>>
    %27 = tpu.memref_squeeze %26 : memref<1x!tpu.dma_semaphore, #tpu.memory_space<semaphore_mem>> -> memref<!tpu.dma_semaphore, #tpu.memory_space<semaphore_mem>>
    tpu.wait_dma2 semaphore(%27 : memref<!tpu.dma_semaphore, #tpu.memory_space<semaphore_mem>>) src(%24 : memref<64x128xf32, #tpu.memory_space<any>>) dst(%25 : memref<64x128xf32, #tpu.memory_space<any>>)
    %c2_i32_26 = arith.constant 2 : i32
    %c128_i32_27 = arith.constant 128 : i32
    %c0_i32_28 = arith.constant 0 : i32
    %28 = tpu.memref_slice %arg0[%c128_i32_27, %c0_i32_28] : memref<256x128xf32, #tpu.memory_space<any>> -> memref<64x128xf32, #tpu.memory_space<any>>
    %c128_i32_29 = arith.constant 128 : i32
    %c0_i32_30 = arith.constant 0 : i32
    %29 = tpu.memref_slice %arg2[%c128_i32_29, %c0_i32_30] : memref<320x128xf32, #tpu.memory_space<any>> -> memref<64x128xf32, #tpu.memory_space<any>>
    %30 = tpu.memref_slice %arg3[%c2_i32_26] : memref<5x!tpu.dma_semaphore, #tpu.memory_space<semaphore_mem>> -> memref<1x!tpu.dma_semaphore, #tpu.memory_space<semaphore_mem>>
    %31 = tpu.memref_squeeze %30 : memref<1x!tpu.dma_semaphore, #tpu.memory_space<semaphore_mem>> -> memref<!tpu.dma_semaphore, #tpu.memory_space<semaphore_mem>>
    tpu.wait_dma2 semaphore(%31 : memref<!tpu.dma_semaphore, #tpu.memory_space<semaphore_mem>>) src(%28 : memref<64x128xf32, #tpu.memory_space<any>>) dst(%29 : memref<64x128xf32, #tpu.memory_space<any>>)
    %c3_i32_31 = arith.constant 3 : i32
    %c192_i32_32 = arith.constant 192 : i32
    %c0_i32_33 = arith.constant 0 : i32
    %32 = tpu.memref_slice %arg0[%c192_i32_32, %c0_i32_33] : memref<256x128xf32, #tpu.memory_space<any>> -> memref<64x128xf32, #tpu.memory_space<any>>
    %c192_i32_34 = arith.constant 192 : i32
    %c0_i32_35 = arith.constant 0 : i32
    %33 = tpu.memref_slice %arg2[%c192_i32_34, %c0_i32_35] : memref<320x128xf32, #tpu.memory_space<any>> -> memref<64x128xf32, #tpu.memory_space<any>>
    %34 = tpu.memref_slice %arg3[%c3_i32_31] : memref<5x!tpu.dma_semaphore, #tpu.memory_space<semaphore_mem>> -> memref<1x!tpu.dma_semaphore, #tpu.memory_space<semaphore_mem>>
    %35 = tpu.memref_squeeze %34 : memref<1x!tpu.dma_semaphore, #tpu.memory_space<semaphore_mem>> -> memref<!tpu.dma_semaphore, #tpu.memory_space<semaphore_mem>>
    tpu.wait_dma2 semaphore(%35 : memref<!tpu.dma_semaphore, #tpu.memory_space<semaphore_mem>>) src(%32 : memref<64x128xf32, #tpu.memory_space<any>>) dst(%33 : memref<64x128xf32, #tpu.memory_space<any>>)
    %c4_i32_36 = arith.constant 4 : i32
    %c0_i32_37 = arith.constant 0 : i32
    %c0_i32_38 = arith.constant 0 : i32
    %36 = tpu.memref_slice %arg1[%c0_i32_37, %c0_i32_38] : memref<64x128xf32, #tpu.memory_space<any>> -> memref<64x128xf32, #tpu.memory_space<any>>
    %c256_i32_39 = arith.constant 256 : i32
    %c0_i32_40 = arith.constant 0 : i32
    %37 = tpu.memref_slice %arg2[%c256_i32_39, %c0_i32_40] : memref<320x128xf32, #tpu.memory_space<any>> -> memref<64x128xf32, #tpu.memory_space<any>>
    %38 = tpu.memref_slice %arg3[%c4_i32_36] : memref<5x!tpu.dma_semaphore, #tpu.memory_space<semaphore_mem>> -> memref<1x!tpu.dma_semaphore, #tpu.memory_space<semaphore_mem>>
    %39 = tpu.memref_squeeze %38 : memref<1x!tpu.dma_semaphore, #tpu.memory_space<semaphore_mem>> -> memref<!tpu.dma_semaphore, #tpu.memory_space<semaphore_mem>>
    tpu.wait_dma2 semaphore(%39 : memref<!tpu.dma_semaphore, #tpu.memory_space<semaphore_mem>>) src(%36 : memref<64x128xf32, #tpu.memory_space<any>>) dst(%37 : memref<64x128xf32, #tpu.memory_space<any>>)
    return
  }
}

</mosaic_0001>

<llo_original>
// kernel: tpu_custom_call.1
$region0: #{tpu_custom_call.1}
  #allocation0 [shape = 'u32[]', space=smem, size = 0x4, offset = 0x4, fixed_abs, tag = 'smem constant byte address 0x4 - core index']
  #allocation1 [shape = 'u32[72,128]{1,0:T(1,128)}', space=vmem, size = 0x9000, scoped, tag = 'internal scratch']
  #allocation2 [shape = 's32[5]{0}', space=sflag, size = 0x14, scoped, tag = 'scratch operand']
  #allocation3 [shape = 's32[]', space=sflag, size = 0x4, offset = 0, fixed_abs, tag = 'sflag constant byte address 0x0 - dummy sync flag']
  #allocation4 [shape = 'u32[0]{0}', space=smem, size = 0, offset = 0, fixed_abs, tag = 'smem constant byte address 0x0 - null']
  #allocation5 [shape = 's32[]', space=sflag, size = 0x4, offset = 0, fixed_abs, tag = 'sflag constant byte address 0x0 - dummy sync flag']
  #allocation6 [shape = 'u32[0]{0}', space=smem, size = 0, offset = 0, fixed_abs, tag = 'smem constant byte address 0x0 - null']
  #allocation7 [shape = 's32[]', space=sflag, size = 0x4, offset = 0, fixed_abs, tag = 'sflag constant byte address 0x0 - dummy sync flag']
  #allocation8 [shape = 'u32[0]{0}', space=smem, size = 0, offset = 0, fixed_abs, tag = 'smem constant byte address 0x0 - null']
  #allocation9 [shape = 's32[]', space=sflag, size = 0x4, offset = 0, fixed_abs, tag = 'sflag constant byte address 0x0 - dummy sync flag']
  #allocation10 [shape = 'u32[0]{0}', space=smem, size = 0, offset = 0, fixed_abs, tag = 'smem constant byte address 0x0 - null']
  #allocation11 [shape = 's32[]', space=sflag, size = 0x4, offset = 0, fixed_abs, tag = 'sflag constant byte address 0x0 - dummy sync flag']
  #allocation12 [shape = 'u32[0]{0}', space=smem, size = 0, offset = 0, fixed_abs, tag = 'smem constant byte address 0x0 - null']
  %s0 = inlined_call_operand.hbm [shape: f32[256,128], index: 0, kind: input, shape index: {}]
  %s1 = inlined_call_operand.hbm [shape: f32[64,128], index: 1, kind: input, shape index: {}]
  %s2 = inlined_call_operand.hbm [shape: f32[320,128], index: 2, kind: output, shape index: {}]
  %s3 = sld [smem:[#allocation0]]
  $region2: #{tpu_custom_call.1} parent=0
    _
  %s5 = ssub.s32 1, %s3
  %s6 = scalar_select 0, %s5, %s3
  %s8 = sshll.u32 1, 14
  %s9 = sxor.u32 4294967295, %s8
  %s11 = sshll.u32 %s0, 4
  %s12 = int_to_ptr.hbm [resolvable:$true] %s11
  %s13 = sshll.u32 %s2, 4
  %s14 = int_to_ptr.hbm [resolvable:$true] %s13
  %17 = dma.general %s12, 1024, %s14, [#allocation2], [#allocation3], [#allocation4], 0, 0
  %s18 = scalar_lea.hbm %s0, 64
  %s19 = scalar_lea.hbm %s2, 64
  %s20 = scalar_lea.sflag [#allocation2], 1
  %s22 = sshll.u32 1, 14
  %s23 = sxor.u32 4294967295, %s22
  %s25 = sshll.u32 %s18, 4
  %s26 = int_to_ptr.hbm [resolvable:$true] %s25
  %s27 = sshll.u32 %s19, 4
  %s28 = int_to_ptr.hbm [resolvable:$true] %s27
  %31 = dma.general %s26, 1024, %s28, %s20, [#allocation5], [#allocation6], 0, 0
  %s32 = scalar_lea.hbm %s0, 128
  %s33 = scalar_lea.hbm %s2, 128
  %s34 = scalar_lea.sflag [#allocation2], 2
  %s36 = sshll.u32 1, 14
  %s37 = sxor.u32 4294967295, %s36
  %s39 = sshll.u32 %s32, 4
  %s40 = int_to_ptr.hbm [resolvable:$true] %s39
  %s41 = sshll.u32 %s33, 4
  %s42 = int_to_ptr.hbm [resolvable:$true] %s41
  %45 = dma.general %s40, 1024, %s42, %s34, [#allocation7], [#allocation8], 0, 0
  %s46 = scalar_lea.hbm %s0, 192
  %s47 = scalar_lea.hbm %s2, 192
  %s48 = scalar_lea.sflag [#allocation2], 3
  %s50 = sshll.u32 1, 14
  %s51 = sxor.u32 4294967295, %s50
  %s53 = sshll.u32 %s46, 4
  %s54 = int_to_ptr.hbm [resolvable:$true] %s53
  %s55 = sshll.u32 %s47, 4
  %s56 = int_to_ptr.hbm [resolvable:$true] %s55
  %59 = dma.general %s54, 1024, %s56, %s48, [#allocation9], [#allocation10], 0, 0
  %s60 = scalar_lea.hbm %s2, 256
  %s61 = scalar_lea.sflag [#allocation2], 4
  %s63 = sshll.u32 1, 14
  %s64 = sxor.u32 4294967295, %s63
  %s66 = sshll.u32 %s1, 4
  %s67 = int_to_ptr.hbm [resolvable:$true] %s66
  %s68 = sshll.u32 %s60, 4
  %s69 = int_to_ptr.hbm [resolvable:$true] %s68
  %72 = dma.general %s67, 1024, %s69, %s61, [#allocation11], [#allocation12], 0, 0
  %s73 = smul.u32 64, 1
  %s74 = sshll.u32 %s73, 4
  %75 = dma.done [#allocation2], %s74
  %s76 = sshll.u32 %s73, 4
  %77 = dma.done %s20, %s76
  %s78 = sshll.u32 %s73, 4
  %79 = dma.done %s34, %s78
  %s80 = sshll.u32 %s73, 4
  %81 = dma.done %s48, %s80
  %s82 = sshll.u32 %s73, 4
  %83 = dma.done %s61, %s82
  %84 = vsyncmov [#allocation2]
  %s85 = vpop.sfrf %84
  %p86 = scmp.eq.s32.totalorder %s85, 0
  %p87 = pneg %p86
  %89 = shalt.err (%p87)
  %s90 = scalar_lea.sflag [#allocation2], 1
  %91 = vsyncmov %s90
  %s92 = vpop.sfrf %91
  %p93 = scmp.eq.s32.totalorder %s92, 0
  %p94 = pneg %p93
  %96 = shalt.err (%p94)
  %s97 = scalar_lea.sflag [#allocation2], 2
  %98 = vsyncmov %s97
  %s99 = vpop.sfrf %98
  %p100 = scmp.eq.s32.totalorder %s99, 0
  %p101 = pneg %p100
  %103 = shalt.err (%p101)
  %s104 = scalar_lea.sflag [#allocation2], 3
  %105 = vsyncmov %s104
  %s106 = vpop.sfrf %105
  %p107 = scmp.eq.s32.totalorder %s106, 0
  %p108 = pneg %p107
  %110 = shalt.err (%p108)
  %s111 = scalar_lea.sflag [#allocation2], 4
  %112 = vsyncmov %s111
  %s113 = vpop.sfrf %112
  %p114 = scmp.eq.s32.totalorder %s113, 0
  %p115 = pneg %p114
  %117 = shalt.err (%p115)

</llo_original>
